<compile_context>
chip_gen: v5e
topology: v5e:2x2
jax: 0.10.0
libtpu: 0.0.40
codegen_flags: <defaults>
</compile_context>

<pallas_src>
import functools

import jax
import jax.numpy as jnp
from jax.experimental import pallas as pl
from jax.experimental.pallas import tpu as pltpu


def _attention_kernel(x_ref, mem_ref, wq_ref, bq_ref, wk_ref, bk_ref,
                      wv_ref, bv_ref, wo_ref, bo_ref, o_ref,
                      q_sc, m_sc, l_sc, acc_sc, *, hard, scale):
    li = pl.program_id(0)

    @pl.when(li == 0)
    def _init():
        q = jnp.dot(x_ref[...], wq_ref[...], preferred_element_type=jnp.float32)
        # TODO(synk): training-mode dropout on Q/K/V/output not wired
        #             (pltpu.prng_seed + stateful_bernoulli); eval mode == identity.
        q_sc[...] = (q + bq_ref[...]) * scale
        m_sc[...] = jnp.full_like(m_sc[...], -jnp.inf)
        l_sc[...] = jnp.zeros_like(l_sc[...])
        acc_sc[...] = jnp.zeros_like(acc_sc[...])

    mem = mem_ref[...]                                                  # (tl, memory_dim)
    k = jnp.dot(mem, wk_ref[...], preferred_element_type=jnp.float32) + bk_ref[...]
    v = jnp.dot(mem, wv_ref[...], preferred_element_type=jnp.float32) + bv_ref[...]

    # scores (1, tl): contract Q (1, dkv) with K (tl, dkv) over dkv (no K transpose).
    s = jax.lax.dot_general(q_sc[...], k, (((1,), (1,)), ((), ())),
                            preferred_element_type=jnp.float32)

    if hard:
        # Hard attention == the V row at the FIRST global argmax of the scores.
        tile_max = jnp.max(s, axis=-1, keepdims=True)                   # (1, 1)
        iota = jax.lax.broadcasted_iota(jnp.float32, s.shape, 1)        # (1, tl)
        cand = jnp.where(s == tile_max, iota, jnp.float32(s.shape[-1]))
        local_idx = jnp.min(cand, axis=-1, keepdims=True)               # first in-tile max
        onehot = (iota == local_idx).astype(jnp.float32)                # (1, tl)
        row = jnp.dot(onehot, v, preferred_element_type=jnp.float32)    # (1, dkv)
        take = tile_max > m_sc[...]          # strict ">" keeps the earlier tile on ties
        m_sc[...] = jnp.where(take, tile_max, m_sc[...])
        acc_sc[...] = jnp.where(take, row, acc_sc[...])
    else:
        m_prev = m_sc[...]
        m_new = jnp.maximum(m_prev, jnp.max(s, axis=-1, keepdims=True))
        alpha = jnp.exp(m_prev - m_new)
        p = jnp.exp(s - m_new)                                          # (1, tl)
        l_sc[...] = alpha * l_sc[...] + jnp.sum(p, axis=-1, keepdims=True)
        acc_sc[...] = alpha * acc_sc[...] + jnp.dot(
            p, v, preferred_element_type=jnp.float32)
        m_sc[...] = m_new

    @pl.when(li == pl.num_programs(0) - 1)
    def _finalize():
        feat = acc_sc[...] if hard else acc_sc[...] / l_sc[...]
        out = jnp.dot(feat, wo_ref[...], preferred_element_type=jnp.float32)
        o_ref[...] = (out + bo_ref[...]).astype(o_ref.dtype)


def attention_forward(x, memory, wq, bq, wk, bk, wv, bv, wo, bo,
                      *, memory2=None, self_attention_decoder=False,
                      hard_attention=False, head_n=1, tl=64):
    """Fused single-query attention forward. Weights stored [in_features, out_features]."""
    if head_n != 1:
        # TODO(synk): head_N > 1 relies on PyTorch's interleaving view/permute; unsupported.
        raise NotImplementedError("only head_N == 1 is supported")

    mem = memory2 if self_attention_decoder else memory
    if mem.ndim > 2:
        mem = mem[0]

    x2 = x.reshape(1, -1)
    hidden_dim = x2.shape[1]
    L, memory_dim = mem.shape
    dkv = wq.shape[1]
    output_dim = wo.shape[1]
    scale = float(dkv // head_n) ** -0.5

    # Memory-length tile: multiple of 8 sublanes and an exact divisor of L,
    # otherwise fall back to a single full-length tile (full-dim blocks are legal).
    if tl % 8 != 0 or L % tl != 0:
        tl = L
    grid = (L // tl,)

    flops = int(2 * hidden_dim * dkv + 4 * L * memory_dim * dkv
                + 4 * L * dkv + 2 * dkv * output_dim)
    bytes_accessed = int(4 * (hidden_dim + L * memory_dim
                              + hidden_dim * dkv + 2 * memory_dim * dkv
                              + dkv * output_dim + 3 * dkv + 2 * output_dim))

    kernel = functools.partial(_attention_kernel, hard=hard_attention, scale=scale)

    out = pl.pallas_call(
        kernel,
        out_shape=jax.ShapeDtypeStruct((1, output_dim), jnp.float32),
        grid_spec=pltpu.PrefetchScalarGridSpec(
            num_scalar_prefetch=0,
            grid=grid,
            in_specs=[
                pl.BlockSpec((1, hidden_dim), lambda l: (0, 0)),       # x (resident)
                pl.BlockSpec((tl, memory_dim), lambda l: (l, 0)),      # memory tile (streamed)
                pl.BlockSpec((hidden_dim, dkv), lambda l: (0, 0)),     # Wq (resident)
                pl.BlockSpec((1, dkv), lambda l: (0, 0)),              # bq
                pl.BlockSpec((memory_dim, dkv), lambda l: (0, 0)),     # Wk
                pl.BlockSpec((1, dkv), lambda l: (0, 0)),              # bk
                pl.BlockSpec((memory_dim, dkv), lambda l: (0, 0)),     # Wv
                pl.BlockSpec((1, dkv), lambda l: (0, 0)),              # bv
                pl.BlockSpec((dkv, output_dim), lambda l: (0, 0)),     # Wo
                pl.BlockSpec((1, output_dim), lambda l: (0, 0)),       # bo
            ],
            out_specs=pl.BlockSpec((1, output_dim), lambda l: (0, 0)),
            scratch_shapes=[
                pltpu.VMEM((1, dkv), jnp.float32),   # scaled Q
                pltpu.VMEM((1, 1), jnp.float32),     # running max / best score
                pltpu.VMEM((1, 1), jnp.float32),     # running softmax denominator
                pltpu.VMEM((1, dkv), jnp.float32),   # weighted-V acc / best V row
            ],
        ),
        compiler_params=pltpu.CompilerParams(
            # The L axis carries the online-softmax reduction state -> "arbitrary".
            dimension_semantics=("arbitrary",)),
        cost_estimate=pl.CostEstimate(
            flops=flops, transcendentals=int(2 * L),
            bytes_accessed=bytes_accessed),
    )(x2, mem, wq, bq.reshape(1, -1), wk, bk.reshape(1, -1),
      wv, bv.reshape(1, -1), wo, bo.reshape(1, -1))

    return out.reshape(1, 1, output_dim)


def attention_ref(x, memory, wq, bq, wk, bk, wv, bv, wo, bo, *, hard_attention=False):
    """Pure-JAX reference matching the PyTorch forward (eval mode, head_N=1)."""
    dkv = wq.shape[1]
    q = (x.reshape(1, -1) @ wq + bq) * (dkv ** -0.5)
    k = memory @ wk + bk
    v = memory @ wv + bv
    s = q @ k.T
    w = jax.nn.softmax(s, axis=-1)
    if hard_attention:
        w = jax.nn.one_hot(jnp.argmax(w, axis=-1), s.shape[-1], dtype=s.dtype)
    out = (w @ v) @ wo + bo
    return out.reshape(1, 1, -1)


if __name__ == "__main__":
    # Small but lane-dense shapes (feature dims multiples of 128 per perf review).
    hidden_dim = 128       # decoder hidden size
    memory_dim = 128       # encoder memory feature size
    attention_dkv = 128
    output_dim = 128
    L = 128                # memory length (<= max_length)

    key = jax.random.PRNGKey(0)
    ks = jax.random.split(key, 10)

    x = jax.random.normal(ks[0], (1, hidden_dim), dtype=jnp.float32)
    memory = jax.random.normal(ks[1], (L, memory_dim), dtype=jnp.float32)

    def linear_params(kw, kb, fan_in, fan_out):
        # nn.Linear(fan_in, fan_out) init; weight stored transposed [in, out]
        # so the kernel computes x @ W directly (semantics preserved).
        lim = 1.0 / jnp.sqrt(fan_in)
        w = jax.random.uniform(kw, (fan_in, fan_out), jnp.float32, -lim, lim)
        b = jax.random.uniform(kb, (fan_out,), jnp.float32, -lim, lim)
        return w, b

    wq, bq = linear_params(ks[2], ks[3], hidden_dim, attention_dkv)
    wk, bk = linear_params(ks[4], ks[5], memory_dim, attention_dkv)
    wv, bv = linear_params(ks[6], ks[7], memory_dim, attention_dkv)
    wo, bo = linear_params(ks[8], ks[9], attention_dkv, output_dim)

    params = (wq, bq, wk, bk, wv, bv, wo, bo)

    for hard in (False, True):
        out = attention_forward(x, memory, *params, hard_attention=hard, tl=64)
        out = jax.block_until_ready(out)
        ref = attention_ref(x, memory, *params, hard_attention=hard)
        assert out.shape == (1, 1, output_dim)
        assert jnp.allclose(out, ref, atol=1e-5, rtol=1e-5), f"mismatch (hard={hard})"

    print("KERNEL_OK")
</pallas_src>

<mosaic_0001>
module attributes {stable_mosaic.version = 11 : i64} {
  func.func @_attention_kernel(%arg0: i32, %arg1: memref<1x128xf32, #tpu.memory_space<vmem>>, %arg2: memref<64x128xf32, #tpu.memory_space<vmem>>, %arg3: memref<128x128xf32, #tpu.memory_space<vmem>>, %arg4: memref<1x128xf32, #tpu.memory_space<vmem>>, %arg5: memref<128x128xf32, #tpu.memory_space<vmem>>, %arg6: memref<1x128xf32, #tpu.memory_space<vmem>>, %arg7: memref<128x128xf32, #tpu.memory_space<vmem>>, %arg8: memref<1x128xf32, #tpu.memory_space<vmem>>, %arg9: memref<128x128xf32, #tpu.memory_space<vmem>>, %arg10: memref<1x128xf32, #tpu.memory_space<vmem>>, %arg11: memref<1x128xf32, #tpu.memory_space<vmem>>, %arg12: memref<1x128xf32, #tpu.memory_space<vmem>>, %arg13: memref<1x1xf32, #tpu.memory_space<vmem>>, %arg14: memref<1x1xf32, #tpu.memory_space<vmem>>, %arg15: memref<1x128xf32, #tpu.memory_space<vmem>>) attributes {dimension_semantics = [#tpu.dimension_semantics<arbitrary>], iteration_bounds = array<i64: 2>, scalar_prefetch = 0 : i64, scratch_operands = 4 : i64, tpu.core_type = #tpu.core_type<tc>, window_params = [{pipeline_mode = #tpu.pipeline_mode<synchronous>, transform_indices = @transform_0, window_bounds = array<i64: 1, 128>}, {transform_indices = @transform_1, window_bounds = array<i64: 64, 128>}, {pipeline_mode = #tpu.pipeline_mode<synchronous>, transform_indices = @transform_2, window_bounds = array<i64: 128, 128>}, {pipeline_mode = #tpu.pipeline_mode<synchronous>, transform_indices = @transform_3, window_bounds = array<i64: 1, 128>}, {pipeline_mode = #tpu.pipeline_mode<synchronous>, transform_indices = @transform_4, window_bounds = array<i64: 128, 128>}, {pipeline_mode = #tpu.pipeline_mode<synchronous>, transform_indices = @transform_5, window_bounds = array<i64: 1, 128>}, {pipeline_mode = #tpu.pipeline_mode<synchronous>, transform_indices = @transform_6, window_bounds = array<i64: 128, 128>}, {pipeline_mode = #tpu.pipeline_mode<synchronous>, transform_indices = @transform_7, window_bounds = array<i64: 1, 128>}, {pipeline_mode = #tpu.pipeline_mode<synchronous>, transform_indices = @transform_8, window_bounds = array<i64: 128, 128>}, {pipeline_mode = #tpu.pipeline_mode<synchronous>, transform_indices = @transform_9, window_bounds = array<i64: 1, 128>}, {pipeline_mode = #tpu.pipeline_mode<synchronous>, transform_indices = @transform_10, window_bounds = array<i64: 1, 128>}]} {
    %c0_i32 = arith.constant 0 : i32
    %0 = arith.cmpi eq, %arg0, %c0_i32 : i32
    %1 = arith.extui %0 : i1 to i32
    %c0_i32_0 = arith.constant 0 : i32
    %2 = arith.cmpi ne, %1, %c0_i32_0 : i32
    scf.if %2 {
      %c0_30 = arith.constant 0 : index
      %c0_31 = arith.constant 0 : index
      %41 = vector.load %arg1[%c0_30, %c0_31] : memref<1x128xf32, #tpu.memory_space<vmem>>, vector<1x128xf32>
      %c0_32 = arith.constant 0 : index
      %c0_33 = arith.constant 0 : index
      %42 = vector.load %arg3[%c0_32, %c0_33] : memref<128x128xf32, #tpu.memory_space<vmem>>, vector<128x128xf32>
      %cst_34 = arith.constant dense<0.000000e+00> : vector<1x128xf32>
      %43 = tpu.matmul %41, %42, %cst_34 {dimension_numbers = #tpu.dot_dimension_numbers<[1], [0], [0], [1], [0, 0, 1, 1], [], []>} : vector<1x128xf32>, vector<128x128xf32>, vector<1x128xf32> -> vector<1x128xf32>
      %c0_35 = arith.constant 0 : index
      %c0_36 = arith.constant 0 : index
      %44 = vector.load %arg4[%c0_35, %c0_36] : memref<1x128xf32, #tpu.memory_space<vmem>>, vector<1x128xf32>
      %45 = arith.addf %43, %44 : vector<1x128xf32>
      %cst_37 = arith.constant 0.0883883461 : f32
      %46 = vector.broadcast %cst_37 : f32 to vector<1x128xf32>
      %47 = arith.mulf %45, %46 : vector<1x128xf32>
      %c0_38 = arith.constant 0 : index
      %c0_39 = arith.constant 0 : index
      %48 = vector.load %arg12[%c0_38, %c0_39] : memref<1x128xf32, #tpu.memory_space<vmem>>, vector<1x128xf32>
      tpu.vector_store %arg12[%c0_38, %c0_39], %47 {strides = array<i32>} : memref<1x128xf32, #tpu.memory_space<vmem>>, vector<1x128xf32>,
      %cst_40 = arith.constant 0xFF800000 : f32
      %49 = vector.broadcast %cst_40 : f32 to vector<1x1xf32>
      %c0_41 = arith.constant 0 : index
      %c0_42 = arith.constant 0 : index
      %50 = vector.load %arg13[%c0_41, %c0_42] : memref<1x1xf32, #tpu.memory_space<vmem>>, vector<1x1xf32>
      tpu.vector_store %arg13[%c0_41, %c0_42], %49 {strides = array<i32>} : memref<1x1xf32, #tpu.memory_space<vmem>>, vector<1x1xf32>,
      %cst_43 = arith.constant 0.000000e+00 : f32
      %51 = vector.broadcast %cst_43 : f32 to vector<1x1xf32>
      %c0_44 = arith.constant 0 : index
      %c0_45 = arith.constant 0 : index
      %52 = vector.load %arg14[%c0_44, %c0_45] : memref<1x1xf32, #tpu.memory_space<vmem>>, vector<1x1xf32>
      tpu.vector_store %arg14[%c0_44, %c0_45], %51 {strides = array<i32>} : memref<1x1xf32, #tpu.memory_space<vmem>>, vector<1x1xf32>,
      %cst_46 = arith.constant 0.000000e+00 : f32
      %53 = vector.broadcast %cst_46 : f32 to vector<1x128xf32>
      %c0_47 = arith.constant 0 : index
      %c0_48 = arith.constant 0 : index
      %54 = vector.load %arg15[%c0_47, %c0_48] : memref<1x128xf32, #tpu.memory_space<vmem>>, vector<1x128xf32>
      tpu.vector_store %arg15[%c0_47, %c0_48], %53 {strides = array<i32>} : memref<1x128xf32, #tpu.memory_space<vmem>>, vector<1x128xf32>,
    } else {
    }
    %c0 = arith.constant 0 : index
    %c0_1 = arith.constant 0 : index
    %3 = vector.load %arg2[%c0, %c0_1] : memref<64x128xf32, #tpu.memory_space<vmem>>, vector<64x128xf32>
    %c0_2 = arith.constant 0 : index
    %c0_3 = arith.constant 0 : index
    %4 = vector.load %arg5[%c0_2, %c0_3] : memref<128x128xf32, #tpu.memory_space<vmem>>, vector<128x128xf32>
    %cst = arith.constant dense<0.000000e+00> : vector<64x128xf32>
    %5 = tpu.matmul %3, %4, %cst {dimension_numbers = #tpu.dot_dimension_numbers<[1], [0], [0], [1], [0, 0, 1, 1], [], []>} : vector<64x128xf32>, vector<128x128xf32>, vector<64x128xf32> -> vector<64x128xf32>
    %c0_4 = arith.constant 0 : index
    %c0_5 = arith.constant 0 : index
    %6 = vector.load %arg6[%c0_4, %c0_5] : memref<1x128xf32, #tpu.memory_space<vmem>>, vector<1x128xf32>
    %7 = vector.broadcast %6 : vector<1x128xf32> to vector<64x128xf32>
    %8 = arith.addf %5, %7 : vector<64x128xf32>
    %c0_6 = arith.constant 0 : index
    %c0_7 = arith.constant 0 : index
    %9 = vector.load %arg7[%c0_6, %c0_7] : memref<128x128xf32, #tpu.memory_space<vmem>>, vector<128x128xf32>
    %cst_8 = arith.constant dense<0.000000e+00> : vector<64x128xf32>
    %10 = tpu.matmul %3, %9, %cst_8 {dimension_numbers = #tpu.dot_dimension_numbers<[1], [0], [0], [1], [0, 0, 1, 1], [], []>} : vector<64x128xf32>, vector<128x128xf32>, vector<64x128xf32> -> vector<64x128xf32>
    %c0_9 = arith.constant 0 : index
    %c0_10 = arith.constant 0 : index
    %11 = vector.load %arg8[%c0_9, %c0_10] : memref<1x128xf32, #tpu.memory_space<vmem>>, vector<1x128xf32>
    %12 = vector.broadcast %11 : vector<1x128xf32> to vector<64x128xf32>
    %13 = arith.addf %10, %12 : vector<64x128xf32>
    %c0_11 = arith.constant 0 : index
    %c0_12 = arith.constant 0 : index
    %14 = vector.load %arg12[%c0_11, %c0_12] : memref<1x128xf32, #tpu.memory_space<vmem>>, vector<1x128xf32>
    %cst_13 = arith.constant dense<0.000000e+00> : vector<1x64xf32>
    %15 = tpu.matmul %14, %8, %cst_13 {dimension_numbers = #tpu.dot_dimension_numbers<[1], [1], [0], [0], [0, 0, 1, 0], [], []>} : vector<1x128xf32>, vector<64x128xf32>, vector<1x64xf32> -> vector<1x64xf32>
    %c0_14 = arith.constant 0 : index
    %c0_15 = arith.constant 0 : index
    %16 = vector.load %arg13[%c0_14, %c0_15] : memref<1x1xf32, #tpu.memory_space<vmem>>, vector<1x1xf32>
    %cst_16 = arith.constant dense<0xFF800000> : vector<1xf32>
    %17 = vector.multi_reduction <maximumf>, %15, %cst_16 [1] : vector<1x64xf32> to vector<1xf32>
    %18 = vector.shape_cast %17 : vector<1xf32> to vector<1x1xf32>
    %19 = arith.maximumf %16, %18 : vector<1x1xf32>
    %20 = arith.subf %16, %19 : vector<1x1xf32>
    %21 = math.exp %20 : vector<1x1xf32>
    %22 = vector.broadcast %19 : vector<1x1xf32> to vector<1x64xf32>
    %23 = arith.subf %15, %22 : vector<1x64xf32>
    %24 = math.exp %23 : vector<1x64xf32>
    %c0_17 = arith.constant 0 : index
    %c0_18 = arith.constant 0 : index
    %25 = vector.load %arg14[%c0_17, %c0_18] : memref<1x1xf32, #tpu.memory_space<vmem>>, vector<1x1xf32>
    %26 = arith.mulf %21, %25 : vector<1x1xf32>
    %cst_19 = arith.constant dense<0.000000e+00> : vector<1xf32>
    %27 = vector.multi_reduction <add>, %24, %cst_19 [1] : vector<1x64xf32> to vector<1xf32>
    %28 = vector.shape_cast %27 : vector<1xf32> to vector<1x1xf32>
    %29 = arith.addf %26, %28 : vector<1x1xf32>
    %c0_20 = arith.constant 0 : index
    %c0_21 = arith.constant 0 : index
    %30 = vector.load %arg14[%c0_20, %c0_21] : memref<1x1xf32, #tpu.memory_space<vmem>>, vector<1x1xf32>
    tpu.vector_store %arg14[%c0_20, %c0_21], %29 {strides = array<i32>} : memref<1x1xf32, #tpu.memory_space<vmem>>, vector<1x1xf32>,
    %c0_22 = arith.constant 0 : index
    %c0_23 = arith.constant 0 : index
    %31 = vector.load %arg15[%c0_22, %c0_23] : memref<1x128xf32, #tpu.memory_space<vmem>>, vector<1x128xf32>
    %32 = vector.broadcast %21 : vector<1x1xf32> to vector<1x128xf32>
    %33 = arith.mulf %32, %31 : vector<1x128xf32>
    %cst_24 = arith.constant dense<0.000000e+00> : vector<1x128xf32>
    %34 = tpu.matmul %24, %13, %cst_24 {dimension_numbers = #tpu.dot_dimension_numbers<[1], [0], [0], [1], [0, 0, 1, 1], [], []>} : vector<1x64xf32>, vector<64x128xf32>, vector<1x128xf32> -> vector<1x128xf32>
    %35 = arith.addf %33, %34 : vector<1x128xf32>
    %c0_25 = arith.constant 0 : index
    %c0_26 = arith.constant 0 : index
    %36 = vector.load %arg15[%c0_25, %c0_26] : memref<1x128xf32, #tpu.memory_space<vmem>>, vector<1x128xf32>
    tpu.vector_store %arg15[%c0_25, %c0_26], %35 {strides = array<i32>} : memref<1x128xf32, #tpu.memory_space<vmem>>, vector<1x128xf32>,
    %c0_27 = arith.constant 0 : index
    %c0_28 = arith.constant 0 : index
    %37 = vector.load %arg13[%c0_27, %c0_28] : memref<1x1xf32, #tpu.memory_space<vmem>>, vector<1x1xf32>
    tpu.vector_store %arg13[%c0_27, %c0_28], %19 {strides = array<i32>} : memref<1x1xf32, #tpu.memory_space<vmem>>, vector<1x1xf32>,
    %c1_i32 = arith.constant 1 : i32
    %38 = arith.cmpi eq, %arg0, %c1_i32 : i32
    %39 = arith.extui %38 : i1 to i32
    %c0_i32_29 = arith.constant 0 : i32
    %40 = arith.cmpi ne, %39, %c0_i32_29 : i32
    scf.if %40 {
      %c0_30 = arith.constant 0 : index
      %c0_31 = arith.constant 0 : index
      %41 = vector.load %arg15[%c0_30, %c0_31] : memref<1x128xf32, #tpu.memory_space<vmem>>, vector<1x128xf32>
      %c0_32 = arith.constant 0 : index
      %c0_33 = arith.constant 0 : index
      %42 = vector.load %arg14[%c0_32, %c0_33] : memref<1x1xf32, #tpu.memory_space<vmem>>, vector<1x1xf32>
      %43 = vector.broadcast %42 : vector<1x1xf32> to vector<1x128xf32>
      %44 = arith.divf %41, %43 : vector<1x128xf32>
      %c0_34 = arith.constant 0 : index
      %c0_35 = arith.constant 0 : index
      %45 = vector.load %arg9[%c0_34, %c0_35] : memref<128x128xf32, #tpu.memory_space<vmem>>, vector<128x128xf32>
      %cst_36 = arith.constant dense<0.000000e+00> : vector<1x128xf32>
      %46 = tpu.matmul %44, %45, %cst_36 {dimension_numbers = #tpu.dot_dimension_numbers<[1], [0], [0], [1], [0, 0, 1, 1], [], []>} : vector<1x128xf32>, vector<128x128xf32>, vector<1x128xf32> -> vector<1x128xf32>
      %c0_37 = arith.constant 0 : index
      %c0_38 = arith.constant 0 : index
      %47 = vector.load %arg10[%c0_37, %c0_38] : memref<1x128xf32, #tpu.memory_space<vmem>>, vector<1x128xf32>
      %48 = arith.addf %46, %47 : vector<1x128xf32>
      %c0_39 = arith.constant 0 : index
      %c0_40 = arith.constant 0 : index
      %49 = vector.load %arg11[%c0_39, %c0_40] : memref<1x128xf32, #tpu.memory_space<vmem>>, vector<1x128xf32>
      tpu.vector_store %arg11[%c0_39, %c0_40], %48 {strides = array<i32>} : memref<1x128xf32, #tpu.memory_space<vmem>>, vector<1x128xf32>,
    } else {
    }
    return
  }
  func.func @transform_0(%arg0: i32) -> (i32, i32) {
    %c0_i32 = arith.constant 0 : i32
    %c0_i32_0 = arith.constant 0 : i32
    %c0_i32_1 = arith.constant 0 : i32
    return %c0_i32, %c0_i32_0 : i32, i32
  }
  func.func @transform_1(%arg0: i32) -> (i32, i32) {
    %c0_i32 = arith.constant 0 : i32
    %c0_i32_0 = arith.constant 0 : i32
    return %arg0, %c0_i32 : i32, i32
  }
  func.func @transform_2(%arg0: i32) -> (i32, i32) {
    %c0_i32 = arith.constant 0 : i32
    %c0_i32_0 = arith.constant 0 : i32
    %c0_i32_1 = arith.constant 0 : i32
    return %c0_i32, %c0_i32_0 : i32, i32
  }
  func.func @transform_3(%arg0: i32) -> (i32, i32) {
    %c0_i32 = arith.constant 0 : i32
    %c0_i32_0 = arith.constant 0 : i32
    %c0_i32_1 = arith.constant 0 : i32
    return %c0_i32, %c0_i32_0 : i32, i32
  }
  func.func @transform_4(%arg0: i32) -> (i32, i32) {
    %c0_i32 = arith.constant 0 : i32
    %c0_i32_0 = arith.constant 0 : i32
    %c0_i32_1 = arith.constant 0 : i32
    return %c0_i32, %c0_i32_0 : i32, i32
  }
  func.func @transform_5(%arg0: i32) -> (i32, i32) {
    %c0_i32 = arith.constant 0 : i32
    %c0_i32_0 = arith.constant 0 : i32
    %c0_i32_1 = arith.constant 0 : i32
    return %c0_i32, %c0_i32_0 : i32, i32
  }
  func.func @transform_6(%arg0: i32) -> (i32, i32) {
    %c0_i32 = arith.constant 0 : i32
    %c0_i32_0 = arith.constant 0 : i32
    %c0_i32_1 = arith.constant 0 : i32
    return %c0_i32, %c0_i32_0 : i32, i32
  }
  func.func @transform_7(%arg0: i32) -> (i32, i32) {
    %c0_i32 = arith.constant 0 : i32
    %c0_i32_0 = arith.constant 0 : i32
    %c0_i32_1 = arith.constant 0 : i32
    return %c0_i32, %c0_i32_0 : i32, i32
  }
  func.func @transform_8(%arg0: i32) -> (i32, i32) {
    %c0_i32 = arith.constant 0 : i32
    %c0_i32_0 = arith.constant 0 : i32
    %c0_i32_1 = arith.constant 0 : i32
    return %c0_i32, %c0_i32_0 : i32, i32
  }
  func.func @transform_9(%arg0: i32) -> (i32, i32) {
    %c0_i32 = arith.constant 0 : i32
    %c0_i32_0 = arith.constant 0 : i32
    %c0_i32_1 = arith.constant 0 : i32
    return %c0_i32, %c0_i32_0 : i32, i32
  }
  func.func @transform_10(%arg0: i32) -> (i32, i32) {
    %c0_i32 = arith.constant 0 : i32
    %c0_i32_0 = arith.constant 0 : i32
    %c0_i32_1 = arith.constant 0 : i32
    return %c0_i32, %c0_i32_0 : i32, i32
  }
}

</mosaic_0001>

<llo_original>
// kernel: tpu_custom_call.1
$region0: #{tpu_custom_call.1}
  #allocation0 [shape = 'u32[]', space=smem, size = 0x4, offset = 0x4, fixed_abs, tag = 'smem constant byte address 0x4 - core index']
  #allocation1 [shape = 'u32[72,128]{1,0:T(1,128)}', space=vmem, size = 0x9000, scoped, tag = 'internal scratch']
  #allocation2 [shape = 'f32[1,128]{1,0:T(1,128)}', space=vmem, size = 0x200, scoped, tag = 'scratch operand']
  #allocation3 [shape = 'f32[1,1]{1,0:T(1,128)}', space=vmem, size = 0x200, scoped, tag = 'scratch operand']
  #allocation4 [shape = 'f32[1,1]{1,0:T(1,128)}', space=vmem, size = 0x200, scoped, tag = 'scratch operand']
  #allocation5 [shape = 'f32[1,128]{1,0:T(1,128)}', space=vmem, size = 0x200, scoped, tag = 'scratch operand']
  %s0 = inlined_call_operand.hbm [shape: f32[1,128], index: 0, kind: input, shape index: {}]
  %s1 = inlined_call_operand.hbm [shape: f32[128,128], index: 1, kind: input, shape index: {}]
  %s2 = inlined_call_operand.hbm [shape: f32[128,128], index: 2, kind: input, shape index: {}]
  %s3 = inlined_call_operand.vmem [shape: f32[1,128], index: 3, kind: input, shape index: {}]
  %s4 = inlined_call_operand.hbm [shape: f32[128,128], index: 4, kind: input, shape index: {}]
  %s5 = inlined_call_operand.vmem [shape: f32[1,128], index: 5, kind: input, shape index: {}]
  %s6 = inlined_call_operand.hbm [shape: f32[128,128], index: 6, kind: input, shape index: {}]
  %s7 = inlined_call_operand.vmem [shape: f32[1,128], index: 7, kind: input, shape index: {}]
  %s8 = inlined_call_operand.hbm [shape: f32[128,128], index: 8, kind: input, shape index: {}]
  %s9 = inlined_call_operand.vmem [shape: f32[1,128], index: 9, kind: input, shape index: {}]
  %s10 = inlined_call_operand.hbm [shape: f32[1,128], index: 10, kind: output, shape index: {}]
  %s11 = sld [smem:[#allocation0]]
  $region105: #{tpu_custom_call.1} parent=0
    _
  %s13 = ssub.s32 1, %s11
  %s14 = scalar_select 0, %s13, %s11
  $region1: #{tpu_custom_call.1} parent=0
    #allocation6 [shape = 'u8[512]{0}', space=vmem, size = 0x400, scoped, tag = 'input window, operand 0, single buffered']
    #allocation7 [shape = 's32[2]{0}', space=sflag, size = 0x8, scoped, tag = 'scoped memory for tpu_custom_call.1']
    #allocation8 [shape = 's32[2]{0}', space=sflag, size = 0x8, scoped, tag = 'scoped memory for tpu_custom_call.1']
    #allocation9 [shape = 'u8[65536]{0}', space=vmem, size = 0x10000, scoped, tag = 'input window, operand 1']
    #allocation10 [shape = 's32[2]{0}', space=sflag, size = 0x8, scoped, tag = 'scoped memory for tpu_custom_call.1']
    #allocation11 [shape = 'u8[65536]{0}', space=vmem, size = 0x10000, scoped, tag = 'input window, operand 2, single buffered']
    #allocation12 [shape = 'u8[65536]{0}', space=vmem, size = 0x10000, scoped, tag = 'input window, operand 4, single buffered']
    #allocation13 [shape = 's32[1]{0}', space=sflag, size = 0x4, scoped, tag = 'scoped memory for tpu_custom_call.1']
    #allocation14 [shape = 'u8[65536]{0}', space=vmem, size = 0x10000, scoped, tag = 'input window, operand 6, single buffered']
    #allocation15 [shape = 'u8[65536]{0}', space=vmem, size = 0x10000, scoped, tag = 'input window, operand 8, single buffered']
    #allocation16 [shape = 's32[1]{0}', space=sflag, size = 0x4, scoped, tag = 'scoped memory for tpu_custom_call.1']
    #allocation17 [shape = 'u8[512]{0}', space=vmem, size = 0x400, scoped, tag = 'output window, operand 0, single buffered']
    %15 = vsyncpa [#allocation7], 0
    %16 = vsyncpa [#allocation10], 0
    %s17 = scalar_lea.sflag [#allocation10], 1
    %18 = vsyncpa %s17, 0
    %19 = vsyncpa [#allocation13], 0
    %20 = vsyncpa [#allocation16], 0
    %21 = vsyncpa [#allocation8], 0
    loop: start=0, step=1, limit=4
    $region2: #{tpu_custom_call.1} parent=1 // loop_pre_header
      _
    $region3: #{tpu_custom_call.1} parent=1 // loop_header
      %s23 = sphi 0, %s27
      %p24 = scmp.ge.s32.totalorder %s23, 4
      %s31 = sphi 0, %s31
      %s33 = sphi 0, %s31
      %s34 = sphi 0, %s33
      %s48 = sphi 0, %s34
      %s54 = sphi 0, %s56
      %s57 = sphi 0, %s54
      %s58 = sphi 0, %s57
      %s74 = sphi 0, %s58
      %s78 = sphi 0, %s78
      %s80 = sphi 0, %s78
      %s81 = sphi 0, %s80
      %s95 = sphi 0, %s81
      %s99 = sphi 0, %s99
      %s101 = sphi 0, %s99
      %s102 = sphi 0, %s101
      %s116 = sphi 0, %s102
      %s120 = sphi 0, %s120
      %s122 = sphi 0, %s120
      %s123 = sphi 0, %s122
      %s137 = sphi 0, %s123
      %s141 = sphi 0, %s141
      %s143 = sphi 0, %s141
      %s144 = sphi 0, %s143
      %s158 = sphi 0, %s144
      %s162 = sphi 0, %s162
      %s164 = sphi 0, %s162
      %s165 = sphi 0, %s164
      %s179 = sphi 0, %s165
      %s183 = sphi 0, %s183
      %s185 = sphi 0, %s183
      %s186 = sphi 0, %s185
      %s200 = sphi 0, %s186
      %s204 = sphi 0, %s204
      %s206 = sphi 0, %s204
      %s207 = sphi 0, %s206
      %s221 = sphi 0, %s207
      %s225 = sphi 0, %s225
      %s227 = sphi 0, %s225
      %s228 = sphi 0, %s227
      %s242 = sphi 0, %s228
      %s246 = sphi 0, %s246
      %s248 = sphi 0, %s246
      %s249 = sphi 0, %s248
      %s263 = sphi 0, %s249
    $region4: #{tpu_custom_call.1} parent=1 // loop_header_branch
      %26 = sbr.rel (%p24) target = $region8
    $region5: #{tpu_custom_call.1} parent=1 // loop_body
      %s28 = ssub.s32 %s23, 1
      %s29 = ssub.s32 %s23, 2
      %s30 = sadd.s32 %s23, 1
      %s32 = sadd.s32 %s31, 1
      %p35 = scmp.eq.s32.totalorder %s23, 1
      %p36 = scmp.ne.s32.totalorder %s31, %s33
      %p37 = scmp.eq.s32.totalorder %s23, 0
      %p38 = por %p36, %p37
      %p39 = scmp.ne.s32.totalorder %s31, %s33
      %p40 = scmp.eq.s32.totalorder %s28, 1
      %p41 = por %p39, %p40
      %p42 = scmp.ne.s32.totalorder %s33, %s34
      %p43 = scmp.eq.s32.totalorder %s28, 0
      %p44 = por %p42, %p43
      %p45 = scmp.ne.s32.totalorder %s33, %s34
      %p46 = scmp.eq.s32.totalorder %s29, 1
      %p47 = por %p45, %p46
      %p49 = scmp.ne.s32.totalorder %s34, %s48
      %p50 = scmp.eq.s32.totalorder %s29, 0
      %p51 = por %p49, %p50
      %s52 = ssub.s32 %s23, %s30
      %p53 = scmp.eq.s32.totalorder %s52, 0
      %s55 = sadd.s32 %s54, 1
      %s56 = scalar_select %p53, %s54, %s55
      %p59 = pneg %p53
      %p60 = scmp.eq.s32.totalorder %s23, 1
      %p61 = por %p59, %p60
      %p62 = scmp.ne.s32.totalorder %s54, %s57
      %p63 = scmp.eq.s32.totalorder %s23, 0
      %p64 = por %p62, %p63
      %p65 = scmp.ne.s32.totalorder %s54, %s57
      %p66 = scmp.eq.s32.totalorder %s28, 1
      %p67 = por %p65, %p66
      %p68 = scmp.ne.s32.totalorder %s57, %s58
      %p69 = scmp.eq.s32.totalorder %s28, 0
      %p70 = por %p68, %p69
      %p71 = scmp.ne.s32.totalorder %s57, %s58
      %p72 = scmp.eq.s32.totalorder %s29, 1
      %p73 = por %p71, %p72
      %p75 = scmp.ne.s32.totalorder %s58, %s74
      %p76 = scmp.eq.s32.totalorder %s29, 0
      %p77 = por %p75, %p76
      %s79 = sadd.s32 %s78, 1
      %p82 = scmp.eq.s32.totalorder %s23, 1
      %p83 = scmp.ne.s32.totalorder %s78, %s80
      %p84 = scmp.eq.s32.totalorder %s23, 0
      %p85 = por %p83, %p84
      %p86 = scmp.ne.s32.totalorder %s78, %s80
      %p87 = scmp.eq.s32.totalorder %s28, 1
      %p88 = por %p86, %p87
      %p89 = scmp.ne.s32.totalorder %s80, %s81
      %p90 = scmp.eq.s32.totalorder %s28, 0
      %p91 = por %p89, %p90
      %p92 = scmp.ne.s32.totalorder %s80, %s81
      %p93 = scmp.eq.s32.totalorder %s29, 1
      %p94 = por %p92, %p93
      %p96 = scmp.ne.s32.totalorder %s81, %s95
      %p97 = scmp.eq.s32.totalorder %s29, 0
      %p98 = por %p96, %p97
      %s100 = sadd.s32 %s99, 1
      %p103 = scmp.eq.s32.totalorder %s23, 1
      %p104 = scmp.ne.s32.totalorder %s99, %s101
      %p105 = scmp.eq.s32.totalorder %s23, 0
      %p106 = por %p104, %p105
      %p107 = scmp.ne.s32.totalorder %s99, %s101
      %p108 = scmp.eq.s32.totalorder %s28, 1
      %p109 = por %p107, %p108
      %p110 = scmp.ne.s32.totalorder %s101, %s102
      %p111 = scmp.eq.s32.totalorder %s28, 0
      %p112 = por %p110, %p111
      %p113 = scmp.ne.s32.totalorder %s101, %s102
      %p114 = scmp.eq.s32.totalorder %s29, 1
      %p115 = por %p113, %p114
      %p117 = scmp.ne.s32.totalorder %s102, %s116
      %p118 = scmp.eq.s32.totalorder %s29, 0
      %p119 = por %p117, %p118
      %s121 = sadd.s32 %s120, 1
      %p124 = scmp.eq.s32.totalorder %s23, 1
      %p125 = scmp.ne.s32.totalorder %s120, %s122
      %p126 = scmp.eq.s32.totalorder %s23, 0
      %p127 = por %p125, %p126
      %p128 = scmp.ne.s32.totalorder %s120, %s122
      %p129 = scmp.eq.s32.totalorder %s28, 1
      %p130 = por %p128, %p129
      %p131 = scmp.ne.s32.totalorder %s122, %s123
      %p132 = scmp.eq.s32.totalorder %s28, 0
      %p133 = por %p131, %p132
      %p134 = scmp.ne.s32.totalorder %s122, %s123
      %p135 = scmp.eq.s32.totalorder %s29, 1
      %p136 = por %p134, %p135
      %p138 = scmp.ne.s32.totalorder %s123, %s137
      %p139 = scmp.eq.s32.totalorder %s29, 0
      %p140 = por %p138, %p139
      %s142 = sadd.s32 %s141, 1
      %p145 = scmp.eq.s32.totalorder %s23, 1
      %p146 = scmp.ne.s32.totalorder %s141, %s143
      %p147 = scmp.eq.s32.totalorder %s23, 0
      %p148 = por %p146, %p147
      %p149 = scmp.ne.s32.totalorder %s141, %s143
      %p150 = scmp.eq.s32.totalorder %s28, 1
      %p151 = por %p149, %p150
      %p152 = scmp.ne.s32.totalorder %s143, %s144
      %p153 = scmp.eq.s32.totalorder %s28, 0
      %p154 = por %p152, %p153
      %p155 = scmp.ne.s32.totalorder %s143, %s144
      %p156 = scmp.eq.s32.totalorder %s29, 1
      %p157 = por %p155, %p156
      %p159 = scmp.ne.s32.totalorder %s144, %s158
      %p160 = scmp.eq.s32.totalorder %s29, 0
      %p161 = por %p159, %p160
      %s163 = sadd.s32 %s162, 1
      %p166 = scmp.eq.s32.totalorder %s23, 1
      %p167 = scmp.ne.s32.totalorder %s162, %s164
      %p168 = scmp.eq.s32.totalorder %s23, 0
      %p169 = por %p167, %p168
      %p170 = scmp.ne.s32.totalorder %s162, %s164
      %p171 = scmp.eq.s32.totalorder %s28, 1
      %p172 = por %p170, %p171
      %p173 = scmp.ne.s32.totalorder %s164, %s165
      %p174 = scmp.eq.s32.totalorder %s28, 0
      %p175 = por %p173, %p174
      %p176 = scmp.ne.s32.totalorder %s164, %s165
      %p177 = scmp.eq.s32.totalorder %s29, 1
      %p178 = por %p176, %p177
      %p180 = scmp.ne.s32.totalorder %s165, %s179
      %p181 = scmp.eq.s32.totalorder %s29, 0
      %p182 = por %p180, %p181
      %s184 = sadd.s32 %s183, 1
      %p187 = scmp.eq.s32.totalorder %s23, 1
      %p188 = scmp.ne.s32.totalorder %s183, %s185
      %p189 = scmp.eq.s32.totalorder %s23, 0
      %p190 = por %p188, %p189
      %p191 = scmp.ne.s32.totalorder %s183, %s185
      %p192 = scmp.eq.s32.totalorder %s28, 1
      %p193 = por %p191, %p192
      %p194 = scmp.ne.s32.totalorder %s185, %s186
      %p195 = scmp.eq.s32.totalorder %s28, 0
      %p196 = por %p194, %p195
      %p197 = scmp.ne.s32.totalorder %s185, %s186
      %p198 = scmp.eq.s32.totalorder %s29, 1
      %p199 = por %p197, %p198
      %p201 = scmp.ne.s32.totalorder %s186, %s200
      %p202 = scmp.eq.s32.totalorder %s29, 0
      %p203 = por %p201, %p202
      %s205 = sadd.s32 %s204, 1
      %p208 = scmp.eq.s32.totalorder %s23, 1
      %p209 = scmp.ne.s32.totalorder %s204, %s206
      %p210 = scmp.eq.s32.totalorder %s23, 0
      %p211 = por %p209, %p210
      %p212 = scmp.ne.s32.totalorder %s204, %s206
      %p213 = scmp.eq.s32.totalorder %s28, 1
      %p214 = por %p212, %p213
      %p215 = scmp.ne.s32.totalorder %s206, %s207
      %p216 = scmp.eq.s32.totalorder %s28, 0
      %p217 = por %p215, %p216
      %p218 = scmp.ne.s32.totalorder %s206, %s207
      %p219 = scmp.eq.s32.totalorder %s29, 1
      %p220 = por %p218, %p219
      %p222 = scmp.ne.s32.totalorder %s207, %s221
      %p223 = scmp.eq.s32.totalorder %s29, 0
      %p224 = por %p222, %p223
      %s226 = sadd.s32 %s225, 1
      %p229 = scmp.eq.s32.totalorder %s23, 1
      %p230 = scmp.ne.s32.totalorder %s225, %s227
      %p231 = scmp.eq.s32.totalorder %s23, 0
      %p232 = por %p230, %p231
      %p233 = scmp.ne.s32.totalorder %s225, %s227
      %p234 = scmp.eq.s32.totalorder %s28, 1
      %p235 = por %p233, %p234
      %p236 = scmp.ne.s32.totalorder %s227, %s228
      %p237 = scmp.eq.s32.totalorder %s28, 0
      %p238 = por %p236, %p237
      %p239 = scmp.ne.s32.totalorder %s227, %s228
      %p240 = scmp.eq.s32.totalorder %s29, 1
      %p241 = por %p239, %p240
      %p243 = scmp.ne.s32.totalorder %s228, %s242
      %p244 = scmp.eq.s32.totalorder %s29, 0
      %p245 = por %p243, %p244
      %s247 = sadd.s32 %s246, 1
      %p250 = scmp.eq.s32.totalorder %s23, 1
      %p251 = scmp.ne.s32.totalorder %s246, %s248
      %p252 = scmp.eq.s32.totalorder %s23, 0
      %p253 = por %p251, %p252
      %p254 = scmp.ne.s32.totalorder %s246, %s248
      %p255 = scmp.eq.s32.totalorder %s28, 1
      %p256 = por %p254, %p255
      %p257 = scmp.ne.s32.totalorder %s248, %s249
      %p258 = scmp.eq.s32.totalorder %s28, 0
      %p259 = por %p257, %p258
      %p260 = scmp.ne.s32.totalorder %s248, %s249
      %p261 = scmp.eq.s32.totalorder %s29, 1
      %p262 = por %p260, %p261
      %p264 = scmp.ne.s32.totalorder %s249, %s263
      %p265 = scmp.eq.s32.totalorder %s29, 0
      %p266 = por %p264, %p265
      %p267 = scmp.le.s32.totalorder 1, %s23
      %p268 = scmp.lt.s32.totalorder %s23, 3
      %p269 = pnand %p267, %p268
      %p270 = pneg %p269
      // Predicated region
      $region9: #{tpu_custom_call.1} parent=5 // pred_check
        _
      $region10: #{tpu_custom_call.1} parent=5 // pred_check_branch
        %272 = sbr.rel (%p269) target = $region12
      $region11: #{tpu_custom_call.1} parent=5 // pred_region
        %s273 = ssub.s32 %s23, 1
        // Predicated region
        $region13: #{tpu_custom_call.1} parent=11 // pred_check
          %p274 = pneg %p44
        $region14: #{tpu_custom_call.1} parent=11 // pred_check_branch
          %276 = sbr.rel (%p274) target = $region16
        $region15: #{tpu_custom_call.1} parent=11 // pred_region
          %278 = vsyncadd [#allocation7], 0
          %s280 = sshll.u32 %s0, 4
          %s281 = int_to_ptr.hbm [resolvable:$true] %s280
          %s282 = sshll.u32 [#allocation6], 4
          %s283 = int_to_ptr.vmem [resolvable:$true] %s282
          %285 = dma.hbm_to_vmem [thread:$0]  %s281, 16, %s283, [#allocation7]
        $region16: #{tpu_custom_call.1} parent=11 // pred_fallthru
          _
        // Predicated region
        $region17: #{tpu_custom_call.1} parent=11 // pred_check
          %p286 = pneg %p91
        $region18: #{tpu_custom_call.1} parent=11 // pred_check_branch
          %288 = sbr.rel (%p286) target = $region20
        $region19: #{tpu_custom_call.1} parent=11 // pred_region
          %290 = vsyncadd [#allocation10], 0
          %s291 = sshll.u32 %s2, 4
          %s292 = int_to_ptr.hbm [resolvable:$true] %s291
          %s293 = sshll.u32 [#allocation11], 4
          %s294 = int_to_ptr.vmem [resolvable:$true] %s293
          %299 = dma.hbm_to_vmem [thread:$0]  %s292, 2048, %s294, [#allocation10], 128, 128, 8
        $region20: #{tpu_custom_call.1} parent=11 // pred_fallthru
          _
        // Predicated region
        $region21: #{tpu_custom_call.1} parent=11 // pred_check
          %p300 = pneg %p112
        $region22: #{tpu_custom_call.1} parent=11 // pred_check_branch
          %302 = sbr.rel (%p300) target = $region24
        $region23: #{tpu_custom_call.1} parent=11 // pred_region
          _
        $region24: #{tpu_custom_call.1} parent=11 // pred_fallthru
          _
        // Predicated region
        $region25: #{tpu_custom_call.1} parent=11 // pred_check
          %p303 = pneg %p133
        $region26: #{tpu_custom_call.1} parent=11 // pred_check_branch
          %305 = sbr.rel (%p303) target = $region28
        $region27: #{tpu_custom_call.1} parent=11 // pred_region
          %307 = vsyncadd [#allocation13], 0
          %s308 = sshll.u32 %s4, 4
          %s309 = int_to_ptr.hbm [resolvable:$true] %s308
          %s310 = sshll.u32 [#allocation12], 4
          %s311 = int_to_ptr.vmem [resolvable:$true] %s310
          %316 = dma.hbm_to_vmem [thread:$0]  %s309, 2048, %s311, [#allocation13], 128, 128, 8
        $region28: #{tpu_custom_call.1} parent=11 // pred_fallthru
          _
        // Predicated region
        $region29: #{tpu_custom_call.1} parent=11 // pred_check
          %p317 = pneg %p154
        $region30: #{tpu_custom_call.1} parent=11 // pred_check_branch
          %319 = sbr.rel (%p317) target = $region32
        $region31: #{tpu_custom_call.1} parent=11 // pred_region
          _
        $region32: #{tpu_custom_call.1} parent=11 // pred_fallthru
          _
        // Predicated region
        $region33: #{tpu_custom_call.1} parent=11 // pred_check
          %p320 = pneg %p175
        $region34: #{tpu_custom_call.1} parent=11 // pred_check_branch
          %322 = sbr.rel (%p320) target = $region36
        $region35: #{tpu_custom_call.1} parent=11 // pred_region
          %324 = vsyncadd [#allocation13], 0
          %s325 = sshll.u32 %s6, 4
          %s326 = int_to_ptr.hbm [resolvable:$true] %s325
          %s327 = sshll.u32 [#allocation14], 4
          %s328 = int_to_ptr.vmem [resolvable:$true] %s327
          %333 = dma.hbm_to_vmem [thread:$0]  %s326, 2048, %s328, [#allocation13], 128, 128, 8
        $region36: #{tpu_custom_call.1} parent=11 // pred_fallthru
          _
        // Predicated region
        $region37: #{tpu_custom_call.1} parent=11 // pred_check
          %p334 = pneg %p196
        $region38: #{tpu_custom_call.1} parent=11 // pred_check_branch
          %336 = sbr.rel (%p334) target = $region40
        $region39: #{tpu_custom_call.1} parent=11 // pred_region
          _
        $region40: #{tpu_custom_call.1} parent=11 // pred_fallthru
          _
        // Predicated region
        $region41: #{tpu_custom_call.1} parent=11 // pred_check
          %p337 = pneg %p217
        $region42: #{tpu_custom_call.1} parent=11 // pred_check_branch
          %339 = sbr.rel (%p337) target = $region44
        $region43: #{tpu_custom_call.1} parent=11 // pred_region
          %341 = vsyncadd [#allocation16], 0
          %s342 = sshll.u32 %s8, 4
          %s343 = int_to_ptr.hbm [resolvable:$true] %s342
          %s344 = sshll.u32 [#allocation15], 4
          %s345 = int_to_ptr.vmem [resolvable:$true] %s344
          %350 = dma.hbm_to_vmem [thread:$0]  %s343, 2048, %s345, [#allocation16], 128, 128, 8
        $region44: #{tpu_custom_call.1} parent=11 // pred_fallthru
          _
        // Predicated region
        $region45: #{tpu_custom_call.1} parent=11 // pred_check
          %p351 = pneg %p238
        $region46: #{tpu_custom_call.1} parent=11 // pred_check_branch
          %353 = sbr.rel (%p351) target = $region48
        $region47: #{tpu_custom_call.1} parent=11 // pred_region
          _
        $region48: #{tpu_custom_call.1} parent=11 // pred_fallthru
          _
      $region12: #{tpu_custom_call.1} parent=5 // pred_fallthru
        _
      %p354 = scmp.lt.s32.totalorder %s23, 2
      // Predicated region
      $region49: #{tpu_custom_call.1} parent=5 // pred_check
        %p355 = pneg %p354
      $region50: #{tpu_custom_call.1} parent=5 // pred_check_branch
        %357 = sbr.rel (%p355) target = $region52
      $region51: #{tpu_custom_call.1} parent=5 // pred_region
        // Predicated region
        $region53: #{tpu_custom_call.1} parent=51 // pred_check
          %p358 = pneg %p64
        $region54: #{tpu_custom_call.1} parent=51 // pred_check_branch
          %360 = sbr.rel (%p358) target = $region56
        $region55: #{tpu_custom_call.1} parent=51 // pred_region
          %s361 = sand.u32 %s23, 1
          %s362 = scalar_lea.sflag [#allocation10], %s361
          %s363 = sand.u32 %s54, 1
          %s364 = smul.addr %s363, 64
          %s365 = scalar_lea.vmem [#allocation9], %s364
          %s366 = smul.u32 8, %s23
          %368 = vsyncadd %s362, 0
          %s369 = smul.addr %s366, 8
          %s370 = scalar_lea.hbm %s1, %s369
          %s371 = sshll.u32 %s370, 4
          %s372 = int_to_ptr.hbm [resolvable:$true] %s371
          %s373 = sshll.u32 %s365, 4
          %s374 = int_to_ptr.vmem [resolvable:$true] %s373
          %379 = dma.hbm_to_vmem [thread:$0]  %s372, 1024, %s374, %s362, 128, 128, 8
        $region56: #{tpu_custom_call.1} parent=51 // pred_fallthru
          _
      $region52: #{tpu_custom_call.1} parent=5 // pred_fallthru
        _
      %p380 = scmp.le.s32.totalorder 1, %s23
      %p381 = scmp.lt.s32.totalorder %s23, 3
      %p382 = pnand %p380, %p381
      %p383 = pneg %p382
      // Predicated region
      $region57: #{tpu_custom_call.1} parent=5 // pred_check
        _
      $region58: #{tpu_custom_call.1} parent=5 // pred_check_branch
        %385 = sbr.rel (%p382) target = $region60
      $region59: #{tpu_custom_call.1} parent=5 // pred_region
        %s386 = ssub.s32 %s23, 1
        // Predicated region
        $region61: #{tpu_custom_call.1} parent=59 // pred_check
          %p387 = pneg %p44
        $region62: #{tpu_custom_call.1} parent=59 // pred_check_branch
          %389 = sbr.rel (%p387) target = $region64
        $region63: #{tpu_custom_call.1} parent=59 // pred_region
          %391 = dma.done [#allocation7], 16
        $region64: #{tpu_custom_call.1} parent=59 // pred_fallthru
          _
        %s392 = sand.u32 %s28, 1
        %s393 = scalar_lea.sflag [#allocation10], %s392
        %s394 = sand.u32 %s57, 1
        %s395 = smul.addr %s394, 64
        %s396 = scalar_lea.vmem [#allocation9], %s395
        // Predicated region
        $region65: #{tpu_custom_call.1} parent=59 // pred_check
          %p397 = pneg %p70
        $region66: #{tpu_custom_call.1} parent=59 // pred_check_branch
          %399 = sbr.rel (%p397) target = $region68
        $region67: #{tpu_custom_call.1} parent=59 // pred_region
          %401 = dma.done %s393, 1024
        $region68: #{tpu_custom_call.1} parent=59 // pred_fallthru
          _
        // Predicated region
        $region69: #{tpu_custom_call.1} parent=59 // pred_check
          %p402 = pneg %p91
        $region70: #{tpu_custom_call.1} parent=59 // pred_check_branch
          %404 = sbr.rel (%p402) target = $region72
        $region71: #{tpu_custom_call.1} parent=59 // pred_region
          %406 = dma.done [#allocation10], 2048
        $region72: #{tpu_custom_call.1} parent=59 // pred_fallthru
          _
        // Predicated region
        $region73: #{tpu_custom_call.1} parent=59 // pred_check
          %p407 = pneg %p133
        $region74: #{tpu_custom_call.1} parent=59 // pred_check_branch
          %409 = sbr.rel (%p407) target = $region76
        $region75: #{tpu_custom_call.1} parent=59 // pred_region
          %411 = dma.done [#allocation13], 2048
        $region76: #{tpu_custom_call.1} parent=59 // pred_fallthru
          _
        // Predicated region
        $region77: #{tpu_custom_call.1} parent=59 // pred_check
          %p412 = pneg %p175
        $region78: #{tpu_custom_call.1} parent=59 // pred_check_branch
          %414 = sbr.rel (%p412) target = $region80
        $region79: #{tpu_custom_call.1} parent=59 // pred_region
          %416 = dma.done [#allocation13], 2048
        $region80: #{tpu_custom_call.1} parent=59 // pred_fallthru
          _
        // Predicated region
        $region81: #{tpu_custom_call.1} parent=59 // pred_check
          %p417 = pneg %p217
        $region82: #{tpu_custom_call.1} parent=59 // pred_check_branch
          %419 = sbr.rel (%p417) target = $region84
        $region83: #{tpu_custom_call.1} parent=59 // pred_region
          %421 = dma.done [#allocation16], 2048
        $region84: #{tpu_custom_call.1} parent=59 // pred_fallthru
          _
        %p422 = pneg %p44
        %p423 = pneg %p41
        %s424 = sand.u32 %s28, 1
        %s425 = scalar_lea.sflag [#allocation10], %s424
        %s426 = sand.u32 %s57, 1
        %s427 = smul.addr %s426, 64
        %s428 = scalar_lea.vmem [#allocation9], %s427
        %p429 = pneg %p70
        %p430 = pneg %p67
        %p431 = pneg %p91
        %p432 = pneg %p88
        %p433 = pneg %p112
        %p434 = pneg %p109
        %p435 = pneg %p133
        %p436 = pneg %p130
        %p437 = pneg %p154
        %p438 = pneg %p151
        %p439 = pneg %p175
        %p440 = pneg %p172
        %p441 = pneg %p196
        %p442 = pneg %p193
        %p443 = pneg %p217
        %p444 = pneg %p214
        %p445 = pneg %p238
        %p446 = pneg %p235
        %p447 = pneg %p259
        %p448 = pneg %p256
        %s449 = smul.u32 8, %s28
        %p450 = scmp.eq.s32.totalorder %s28, 0
        // Predicated region
        $region85: #{tpu_custom_call.1} parent=59 // pred_check
          %p451 = pneg %p450
        $region86: #{tpu_custom_call.1} parent=59 // pred_check_branch
          %453 = sbr.rel (%p451) target = $region88
        $region87: #{tpu_custom_call.1} parent=59 // pred_region
          %v454 = vld [vmem:[#allocation6] sm:$0x1]
          %v455 = vld [vmem:[#allocation11] sm:$0xff]
          %v456 = vld [vmem:[#allocation11 + $0x8] sm:$0xff]
          %v457 = vld [vmem:[#allocation11 + $0x10] sm:$0xff]
          %v458 = vld [vmem:[#allocation11 + $0x18] sm:$0xff]
          %v459 = vld [vmem:[#allocation11 + $0x20] sm:$0xff]
          %v460 = vld [vmem:[#allocation11 + $0x28] sm:$0xff]
          %v461 = vld [vmem:[#allocation11 + $0x30] sm:$0xff]
          %v462 = vld [vmem:[#allocation11 + $0x38] sm:$0xff]
          %v463 = vld [vmem:[#allocation11 + $0x40] sm:$0xff]
          %v464 = vld [vmem:[#allocation11 + $0x48] sm:$0xff]
          %v465 = vld [vmem:[#allocation11 + $0x50] sm:$0xff]
          %v466 = vld [vmem:[#allocation11 + $0x58] sm:$0xff]
          %v467 = vld [vmem:[#allocation11 + $0x60] sm:$0xff]
          %v468 = vld [vmem:[#allocation11 + $0x68] sm:$0xff]
          %v469 = vld [vmem:[#allocation11 + $0x70] sm:$0xff]
          %v470 = vld [vmem:[#allocation11 + $0x78] sm:$0xff]
          %v471 = vld [vmem:[%s3] sm:$0x1]
          %472 = vmatpush.msra.mxu0 %v470
          %473 = vmatpush.msra.mxu0 %v469
          %474 = vmatpush.msra.mxu0 %v468
          %475 = vmatpush.msra.mxu0 %v467
          %476 = vmatpush.msra.mxu0 %v466
          %477 = vmatpush.msra.mxu0 %v465
          %478 = vmatpush.msra.mxu0 %v464
          %479 = vmatpush.msra.mxu0 %v463
          %480 = vmatpush.msra.mxu0 %v462
          %481 = vmatpush.msra.mxu0 %v461
          %482 = vmatpush.msra.mxu0 %v460
          %483 = vmatpush.msra.mxu0 %v459
          %484 = vmatpush.msra.mxu0 %v458
          %485 = vmatpush.msra.mxu0 %v457
          %486 = vmatpush.msra.mxu0 %v456
          %487 = vmatpush.msra.mxu0 %v455
          %488 = vmatmul.f32.gmra.mxu0 %v454
          %v489 = vpop.f32.mrf.mxu0
          %v490 = vadd.f32 %v471, %v489
          %491 = vdwg.mxu0
          %v492 = vmul.f32 %v490, 0.088388346
          %493 = vst [vmem:[#allocation2] sm:$0x1] %v492
          %vm494 = vcmask 0
          %495 = vst.msk [vmem:[#allocation3] sm:$0x1] %vm494, -inf
          %496 = vst.msk [vmem:[#allocation4] sm:$0x1] %vm494, 0.0
          %497 = vst [vmem:[#allocation5] sm:$0x1] 0.0
        $region88: #{tpu_custom_call.1} parent=59 // pred_fallthru
          _
        %v498 = vld [vmem:[%s396] sm:$0xff]
        %v499 = vld [vmem:[%s396 + $0x8] sm:$0xff]
        %v500 = vld [vmem:[%s396 + $0x10] sm:$0xff]
        %v501 = vld [vmem:[%s396 + $0x18] sm:$0xff]
        %v502 = vld [vmem:[%s396 + $0x20] sm:$0xff]
        %v503 = vld [vmem:[%s396 + $0x28] sm:$0xff]
        %v504 = vld [vmem:[%s396 + $0x30] sm:$0xff]
        %v505 = vld [vmem:[%s396 + $0x38] sm:$0xff]
        %v506 = vld [vmem:[#allocation12] sm:$0xff]
        %v507 = vld [vmem:[#allocation12 + $0x8] sm:$0xff]
        %v508 = vld [vmem:[#allocation12 + $0x10] sm:$0xff]
        %v509 = vld [vmem:[#allocation12 + $0x18] sm:$0xff]
        %v510 = vld [vmem:[#allocation12 + $0x20] sm:$0xff]
        %v511 = vld [vmem:[#allocation12 + $0x28] sm:$0xff]
        %v512 = vld [vmem:[#allocation12 + $0x30] sm:$0xff]
        %v513 = vld [vmem:[#allocation12 + $0x38] sm:$0xff]
        %v514 = vld [vmem:[#allocation12 + $0x40] sm:$0xff]
        %v515 = vld [vmem:[#allocation12 + $0x48] sm:$0xff]
        %v516 = vld [vmem:[#allocation12 + $0x50] sm:$0xff]
        %v517 = vld [vmem:[#allocation12 + $0x58] sm:$0xff]
        %v518 = vld [vmem:[#allocation12 + $0x60] sm:$0xff]
        %v519 = vld [vmem:[#allocation12 + $0x68] sm:$0xff]
        %v520 = vld [vmem:[#allocation12 + $0x70] sm:$0xff]
        %v521 = vld [vmem:[#allocation12 + $0x78] sm:$0xff]
        %v522 = vld [vmem:[%s5] sm:$0x1]
        %v524 = vperm.slane %v522, 0
        %526 = vmatpush.msra.mxu0 %v521
        %527 = vmatpush.msra.mxu0 %v520
        %528 = vmatpush.msra.mxu0 %v519
        %529 = vmatpush.msra.mxu0 %v518
        %530 = vmatpush.msra.mxu0 %v517
        %531 = vmatpush.msra.mxu0 %v516
        %532 = vmatpush.msra.mxu0 %v515
        %533 = vmatpush.msra.mxu0 %v514
        %534 = vmatpush.msra.mxu0 %v513
        %535 = vmatpush.msra.mxu0 %v512
        %536 = vmatpush.msra.mxu0 %v511
        %537 = vmatpush.msra.mxu0 %v510
        %538 = vmatpush.msra.mxu0 %v509
        %539 = vmatpush.msra.mxu0 %v508
        %540 = vmatpush.msra.mxu0 %v507
        %541 = vmatpush.msra.mxu0 %v506
        %542 = vmatmul.f32.gmra.mxu0 %v498
        %v543 = vpop.f32.mrf.mxu0
        %v544 = vadd.f32 %v524, %v543
        %545 = vmatmul.f32.gmra.mxu0 %v499
        %v546 = vpop.f32.mrf.mxu0
        %v547 = vadd.f32 %v524, %v546
        %548 = vmatmul.f32.gmra.mxu0 %v500
        %v549 = vpop.f32.mrf.mxu0
        %v550 = vadd.f32 %v524, %v549
        %551 = vmatmul.f32.gmra.mxu0 %v501
        %v552 = vpop.f32.mrf.mxu0
        %v553 = vadd.f32 %v524, %v552
        %554 = vmatmul.f32.gmra.mxu0 %v502
        %v555 = vpop.f32.mrf.mxu0
        %v556 = vadd.f32 %v524, %v555
        %557 = vmatmul.f32.gmra.mxu0 %v503
        %v558 = vpop.f32.mrf.mxu0
        %v559 = vadd.f32 %v524, %v558
        %560 = vmatmul.f32.gmra.mxu0 %v504
        %v561 = vpop.f32.mrf.mxu0
        %v562 = vadd.f32 %v524, %v561
        %563 = vmatmul.f32.gmra.mxu0 %v505
        %v564 = vpop.f32.mrf.mxu0
        %v565 = vadd.f32 %v524, %v564
        %566 = vdwg.mxu0
        %v567 = vld [vmem:[#allocation14] sm:$0xff]
        %v568 = vld [vmem:[#allocation14 + $0x8] sm:$0xff]
        %v569 = vld [vmem:[#allocation14 + $0x10] sm:$0xff]
        %v570 = vld [vmem:[#allocation14 + $0x18] sm:$0xff]
        %v571 = vld [vmem:[#allocation14 + $0x20] sm:$0xff]
        %v572 = vld [vmem:[#allocation14 + $0x28] sm:$0xff]
        %v573 = vld [vmem:[#allocation14 + $0x30] sm:$0xff]
        %v574 = vld [vmem:[#allocation14 + $0x38] sm:$0xff]
        %v575 = vld [vmem:[#allocation14 + $0x40] sm:$0xff]
        %v576 = vld [vmem:[#allocation14 + $0x48] sm:$0xff]
        %v577 = vld [vmem:[#allocation14 + $0x50] sm:$0xff]
        %v578 = vld [vmem:[#allocation14 + $0x58] sm:$0xff]
        %v579 = vld [vmem:[#allocation14 + $0x60] sm:$0xff]
        %v580 = vld [vmem:[#allocation14 + $0x68] sm:$0xff]
        %v581 = vld [vmem:[#allocation14 + $0x70] sm:$0xff]
        %v582 = vld [vmem:[#allocation14 + $0x78] sm:$0xff]
        %v583 = vld [vmem:[%s7] sm:$0x1]
        %v585 = vperm.slane %v583, 0
        %587 = vmatpush.msra.mxu0 %v582
        %588 = vmatpush.msra.mxu0 %v581
        %589 = vmatpush.msra.mxu0 %v580
        %590 = vmatpush.msra.mxu0 %v579
        %591 = vmatpush.msra.mxu0 %v578
        %592 = vmatpush.msra.mxu0 %v577
        %593 = vmatpush.msra.mxu0 %v576
        %594 = vmatpush.msra.mxu0 %v575
        %595 = vmatpush.msra.mxu0 %v574
        %596 = vmatpush.msra.mxu0 %v573
        %597 = vmatpush.msra.mxu0 %v572
        %598 = vmatpush.msra.mxu0 %v571
        %599 = vmatpush.msra.mxu0 %v570
        %600 = vmatpush.msra.mxu0 %v569
        %601 = vmatpush.msra.mxu0 %v568
        %602 = vmatpush.msra.mxu0 %v567
        %603 = vmatmul.f32.gmra.mxu0 %v498
        %v604 = vpop.f32.mrf.mxu0
        %v605 = vadd.f32 %v585, %v604
        %606 = vmatmul.f32.gmra.mxu0 %v499
        %v607 = vpop.f32.mrf.mxu0
        %v608 = vadd.f32 %v585, %v607
        %609 = vmatmul.f32.gmra.mxu0 %v500
        %v610 = vpop.f32.mrf.mxu0
        %v611 = vadd.f32 %v585, %v610
        %612 = vmatmul.f32.gmra.mxu0 %v501
        %v613 = vpop.f32.mrf.mxu0
        %v614 = vadd.f32 %v585, %v613
        %615 = vmatmul.f32.gmra.mxu0 %v502
        %v616 = vpop.f32.mrf.mxu0
        %v617 = vadd.f32 %v585, %v616
        %618 = vmatmul.f32.gmra.mxu0 %v503
        %v619 = vpop.f32.mrf.mxu0
        %v620 = vadd.f32 %v585, %v619
        %621 = vmatmul.f32.gmra.mxu0 %v504
        %v622 = vpop.f32.mrf.mxu0
        %v623 = vadd.f32 %v585, %v622
        %624 = vmatmul.f32.gmra.mxu0 %v505
        %v625 = vpop.f32.mrf.mxu0
        %v626 = vadd.f32 %v585, %v625
        %627 = vdwg.mxu0
        %v628 = vld [vmem:[#allocation2] sm:$0x1]
        %629 = vmatpush.xpose.msra.mxu0 0.0
        %630 = vmatpush.xpose.msra.mxu0 0.0
        %631 = vmatpush.xpose.msra.mxu0 0.0
        %632 = vmatpush.xpose.msra.mxu0 0.0
        %633 = vmatpush.xpose.msra.mxu0 0.0
        %634 = vmatpush.xpose.msra.mxu0 0.0
        %635 = vmatpush.xpose.msra.mxu0 0.0
        %636 = vmatpush.xpose.msra.mxu0 0.0
        %637 = vmatpush.xpose.msra.mxu0 %v565
        %638 = vmatpush.xpose.msra.mxu0 %v562
        %639 = vmatpush.xpose.msra.mxu0 %v559
        %640 = vmatpush.xpose.msra.mxu0 %v556
        %641 = vmatpush.xpose.msra.mxu0 %v553
        %642 = vmatpush.xpose.msra.mxu0 %v550
        %643 = vmatpush.xpose.msra.mxu0 %v547
        %644 = vmatpush.xpose.msra.mxu0 %v544
        %645 = vmatmul.f32.gmra.mxu0 %v628
        %v646 = vpop.f32.mrf.mxu0
        %v647 = vadd.f32 0.0, %v646
        %648 = vdwg.mxu0
        %v649 = vld [vmem:[#allocation3] sm:$0x1]
        %vm650 = vcmask 516096
        %v651 = vsel %vm650, %v647, -inf
        %652 = vmax.xlane.f32.xlu0 %v651
        %v653 = vpop.xlane.xlu0 %652
        %v654 = vmax.f32 %v649, %v653
        %v655 = vsub.f32 %v649, %v654
        %v656 = vmul.f32 %v655, 1.442695
        %v657 = vpow.pop %v656
        %659 = vset.pattern.permute.xlu0 0
        %660 = vperm.xlu0 %659, %v654
        %v661 = vpop.permute.xlu0 %660
        %v663 = vperm.slane %v661, 0
        %v664 = vsub.f32 %v647, %v663
        %v665 = vmul.f32 %v664, 1.442695
        %v666 = vpow.pop %v665
        %v667 = vld [vmem:[#allocation4] sm:$0x1]
        %v668 = vmul.f32 %v657, %v667
        %v669 = vsel %vm650, %v666, 0.0
        %670 = vadd.xlane.f32.xlu0 %v669
        %v671 = vpop.xlane.xlu0 %670
        %v672 = vadd.f32 %v668, %v671
        %vm673 = vcmask 0
        %674 = vst.msk [vmem:[#allocation4] sm:$0x1] %vm673, %v672
        %v675 = vld [vmem:[#allocation5] sm:$0x1]
        %677 = vset.pattern.permute.xlu0 0
        %678 = vperm.xlu0 %677, %v657
        %v679 = vpop.permute.xlu0 %678
        %v681 = vperm.slane %v679, 0
        %v682 = vmul.f32 %v681, %v675
        %vm683 = vcmask 523264
        %v685 = vsel %vm683, %v666, 0
        %687 = vmatpush.msra.mxu0 0.0
        %688 = vmatpush.msra.mxu0 0.0
        %689 = vmatpush.msra.mxu0 0.0
        %690 = vmatpush.msra.mxu0 0.0
        %691 = vmatpush.msra.mxu0 0.0
        %692 = vmatpush.msra.mxu0 0.0
        %693 = vmatpush.msra.mxu0 0.0
        %694 = vmatpush.msra.mxu0 0.0
        %695 = vmatpush.msra.mxu0 %v626
        %696 = vmatpush.msra.mxu0 %v623
        %697 = vmatpush.msra.mxu0 %v620
        %698 = vmatpush.msra.mxu0 %v617
        %699 = vmatpush.msra.mxu0 %v614
        %700 = vmatpush.msra.mxu0 %v611
        %701 = vmatpush.msra.mxu0 %v608
        %702 = vmatpush.msra.mxu0 %v605
        %703 = vmatmul.f32.gmra.mxu0 %v685
        %v704 = vpop.f32.mrf.mxu0
        %v705 = vadd.f32 0.0, %v704
        %706 = vdwg.mxu0
        %v707 = vadd.f32 %v682, %v705
        %708 = vst [vmem:[#allocation5] sm:$0x1] %v707
        %709 = vst.msk [vmem:[#allocation3] sm:$0x1] %vm673, %v654
        %p710 = scmp.eq.s32.totalorder %s28, 1
        // Predicated region
        $region89: #{tpu_custom_call.1} parent=59 // pred_check
          %p711 = pneg %p710
        $region90: #{tpu_custom_call.1} parent=59 // pred_check_branch
          %713 = sbr.rel (%p711) target = $region92
        $region91: #{tpu_custom_call.1} parent=59 // pred_region
          %v714 = vld [vmem:[#allocation5] sm:$0x1]
          %v715 = vld [vmem:[#allocation4] sm:$0x1]
          %717 = vset.pattern.permute.xlu0 0
          %718 = vperm.xlu0 %717, %v715
          %v719 = vpop.permute.xlu0 %718
          %v721 = vperm.slane %v719, 0
          %v722 = vrcp.pop %v721
          %v723 = vmul.f32 %v721, %v722
          %v724 = vsub.f32 1.0, %v723
          %v725 = vmul.f32 %v722, %v724
          %v726 = vadd.f32 %v722, %v725
          %vm727 = vweird.f32 %v721
          %vm728 = vweird.f32 %v722
          %vm729 = vmor %vm727, %vm728
          %v730 = vsel %vm729, %v722, %v726
          %v731 = vand.u32 2147483647, %v721
          %vm732 = vcmp.eq.f32.partialorder %v731, 8.507059e+37
          %v733 = vand.u32 %v721, 2147483648
          %v734 = vor.u32 1.1754944e-38, %v733
          %v735 = vsel %vm732, %v734, %v730
          %v736 = vmul.f32 %v714, %v735
          %v737 = vld [vmem:[#allocation15] sm:$0xff]
          %v738 = vld [vmem:[#allocation15 + $0x8] sm:$0xff]
          %v739 = vld [vmem:[#allocation15 + $0x10] sm:$0xff]
          %v740 = vld [vmem:[#allocation15 + $0x18] sm:$0xff]
          %v741 = vld [vmem:[#allocation15 + $0x20] sm:$0xff]
          %v742 = vld [vmem:[#allocation15 + $0x28] sm:$0xff]
          %v743 = vld [vmem:[#allocation15 + $0x30] sm:$0xff]
          %v744 = vld [vmem:[#allocation15 + $0x38] sm:$0xff]
          %v745 = vld [vmem:[#allocation15 + $0x40] sm:$0xff]
          %v746 = vld [vmem:[#allocation15 + $0x48] sm:$0xff]
          %v747 = vld [vmem:[#allocation15 + $0x50] sm:$0xff]
          %v748 = vld [vmem:[#allocation15 + $0x58] sm:$0xff]
          %v749 = vld [vmem:[#allocation15 + $0x60] sm:$0xff]
          %v750 = vld [vmem:[#allocation15 + $0x68] sm:$0xff]
          %v751 = vld [vmem:[#allocation15 + $0x70] sm:$0xff]
          %v752 = vld [vmem:[#allocation15 + $0x78] sm:$0xff]
          %v753 = vld [vmem:[%s9] sm:$0x1]
          %754 = vmatpush.msra.mxu0 %v752
          %755 = vmatpush.msra.mxu0 %v751
          %756 = vmatpush.msra.mxu0 %v750
          %757 = vmatpush.msra.mxu0 %v749
          %758 = vmatpush.msra.mxu0 %v748
          %759 = vmatpush.msra.mxu0 %v747
          %760 = vmatpush.msra.mxu0 %v746
          %761 = vmatpush.msra.mxu0 %v745
          %762 = vmatpush.msra.mxu0 %v744
          %763 = vmatpush.msra.mxu0 %v743
          %764 = vmatpush.msra.mxu0 %v742
          %765 = vmatpush.msra.mxu0 %v741
          %766 = vmatpush.msra.mxu0 %v740
          %767 = vmatpush.msra.mxu0 %v739
          %768 = vmatpush.msra.mxu0 %v738
          %769 = vmatpush.msra.mxu0 %v737
          %770 = vmatmul.f32.gmra.mxu0 %v736
          %v771 = vpop.f32.mrf.mxu0
          %v772 = vadd.f32 %v753, %v771
          %773 = vdwg.mxu0
          %774 = vst [vmem:[#allocation17] sm:$0x1] %v772
        $region92: #{tpu_custom_call.1} parent=59 // pred_fallthru
          _
        // Predicated region
        $region93: #{tpu_custom_call.1} parent=59 // pred_check
          %p775 = pneg %p256
        $region94: #{tpu_custom_call.1} parent=59 // pred_check_branch
          %777 = sbr.rel (%p775) target = $region96
        $region95: #{tpu_custom_call.1} parent=59 // pred_region
          %779 = vsyncadd [#allocation8], 0
          %s781 = sshll.u32 [#allocation17], 4
          %s782 = int_to_ptr.vmem [resolvable:$true] %s781
          %s783 = sshll.u32 %s10, 4
          %s784 = int_to_ptr.hbm [resolvable:$true] %s783
          %786 = dma.vmem_to_hbm [thread:$0]  %s782, 16, %s784, [#allocation8]
        $region96: #{tpu_custom_call.1} parent=59 // pred_fallthru
          _
        // Predicated region
        $region97: #{tpu_custom_call.1} parent=59 // pred_check
          %p787 = pneg %p256
        $region98: #{tpu_custom_call.1} parent=59 // pred_check_branch
          %789 = sbr.rel (%p787) target = $region100
        $region99: #{tpu_custom_call.1} parent=59 // pred_region
          %791 = dma.done [#allocation8], 16
        $region100: #{tpu_custom_call.1} parent=59 // pred_fallthru
          _
      $region60: #{tpu_custom_call.1} parent=5 // pred_fallthru
        _
      %p792 = scmp.le.s32.totalorder 2, %s23
      // Predicated region
      $region101: #{tpu_custom_call.1} parent=5 // pred_check
        %p793 = pneg %p792
      $region102: #{tpu_custom_call.1} parent=5 // pred_check_branch
        %795 = sbr.rel (%p793) target = $region104
      $region103: #{tpu_custom_call.1} parent=5 // pred_region
        %s796 = ssub.s32 %s23, 2
      $region104: #{tpu_custom_call.1} parent=5 // pred_fallthru
        _
    $region6: #{tpu_custom_call.1} parent=1 // loop_footer
      %s27 = sadd.s32 1, %s23
    $region7: #{tpu_custom_call.1} parent=1 // loop_footer_branch
      %22 = sbr.rel target = $region3
    $region8: #{tpu_custom_call.1} parent=1 // loop_exit
      _
    %797 = vsyncpa [#allocation7], 1
    %s798 = scalar_lea.sflag [#allocation7], 1
    %799 = vsyncpa %s798, 1
    %800 = vsyncpa [#allocation10], 1
    %s801 = scalar_lea.sflag [#allocation10], 1
    %802 = vsyncpa %s801, 1
    %803 = vsyncpa [#allocation13], 1
    %804 = vsyncpa [#allocation16], 1
    %805 = vsyncpa [#allocation8], 1
    %s806 = scalar_lea.sflag [#allocation8], 1
    %807 = vsyncpa %s806, 1

</llo_original>
